<compile_context>
chip_gen: v7x
topology: tpu7x:2x2x1
jax: 0.10.0
libtpu: 0.0.40
codegen_flags: <defaults>
</compile_context>

<pallas_src>
import jax
import jax.numpy as jnp
from jax.experimental import pallas as pl
from jax.experimental.pallas import tpu as pltpu


def _round_up(x, m):
    return ((x + m - 1) // m) * m


def _pad_to(x, target, axis):
    pad = target - x.shape[axis]
    if pad <= 0:
        return x
    widths = [(0, 0)] * x.ndim
    widths[axis] = (0, pad)
    return jnp.pad(x, widths)


def _vmem_limit_bytes():
    """Generation-aware scoped-VMEM limit (v5e/v6e: 128 MiB phys, v7x: 64 MiB)."""
    cap = 128 * 1024 * 1024
    try:
        cap = int(getattr(pltpu.get_tpu_info(), "vmem_capacity_bytes", cap))
    except Exception:
        pass
    # ~96 MiB on v5e/v6e, ~48 MiB on v7x.
    return max(16 * 1024 * 1024, min(96 * 1024 * 1024, (cap * 3) // 4))


def _choose_seq_tile(S):
    """Sequence tile: multiple of 16 (bf16 sublane packing), large (<=512),
    with at most ~12.5% sequence padding."""
    S16 = _round_up(S, 16)
    if S16 <= 512:
        return S16, S16
    for ts in (512, 256, 128, 64, 32, 16):
        S_pad = _round_up(S16, ts)
        if (S_pad - S) <= max(S // 8, 16) or ts == 16:
            return ts, S_pad
    return 16, S16  # unreachable


def _choose_batch_tile(B, bytes_per_row, budget):
    """Batch tile rows: fit the double-buffered working set in the VMEM budget
    and keep >= 2 batch blocks when possible (v7x has 2 TensorCores)."""
    if B % 8 != 0:
        return B                      # toy / odd batches: one full-batch block
    tb = 8
    for cand in (16, 32, 64, 128):
        if B % cand != 0 or cand * bytes_per_row > budget:
            break
        if B // cand < 2:             # keep the 'parallel' batch axis shardable
            break
        tb = cand
    return tb


# ---------------------------------------------------------------------------
# Kernel 1: encode (masked mean pool -> linear pooler -> L2 normalize)
# ---------------------------------------------------------------------------
def encode_kernel(h_ref, len_ref, w_ref, b_ref, out_ref, sum_sc):
    s_idx = pl.program_id(1)
    tb, ts, _ = h_ref.shape

    @pl.when(s_idx == 0)
    def _():
        sum_sc[...] = jnp.zeros_like(sum_sc)

    # Rebuild the padding mask from per-row token counts (no mask HBM stream).
    # Keep the select in bf16; upcast only at the f32 accumulate.
    h = h_ref[...]                                            # [tb, ts, H] bf16
    lens = len_ref[...]                                       # [tb, 1]  int32
    pos = jax.lax.broadcasted_iota(jnp.int32, (tb, ts, 1), 1) + s_idx * ts
    mask = (pos < lens[:, None, :]).astype(h.dtype)           # [tb, ts, 1] 0/1
    sum_sc[...] += jnp.sum(h * mask, axis=1, dtype=jnp.float32)   # [tb, H] f32

    @pl.when(s_idx == pl.num_programs(1) - 1)
    def _():
        # Clamp only protects all-padding rows (token count 0); real rows have
        # count >= 1 so the mean matches torch exactly.
        cnt = jnp.maximum(lens.astype(jnp.float32), 1.0)
        reps = sum_sc[...] * pl.reciprocal(cnt, approx=False)      # mean pool
        proj = jnp.dot(reps, w_ref[...],
                       preferred_element_type=jnp.float32) + b_ref[...]
        # F.normalize(dim=-1): max(norm, 1e-12) <=> max(sumsq, 1e-24) w/ rsqrt.
        sq = jnp.sum(proj * proj, axis=-1, keepdims=True)
        out_ref[...] = proj * jax.lax.rsqrt(jnp.maximum(sq, 1e-24))


def encode(hidden, lengths, w, b, *, tb, ts, vmem_limit):
    """hidden [B,S_pad,H] bf16, lengths [B,1] int32, w [H,Dp] f32, b [1,Dp] f32."""
    B, S_pad, H = hidden.shape
    Dp = w.shape[1]
    assert B % tb == 0 and S_pad % ts == 0
    flops = 2 * B * S_pad * H + 2 * B * H * Dp
    bytes_accessed = (hidden.size * hidden.dtype.itemsize + lengths.size * 4
                      + w.size * 4 + b.size * 4 + B * Dp * 4)
    return pl.pallas_call(
        encode_kernel,
        out_shape=jax.ShapeDtypeStruct((B, Dp), jnp.float32),
        grid_spec=pltpu.PrefetchScalarGridSpec(
            num_scalar_prefetch=0,
            grid=(B // tb, S_pad // ts),
            in_specs=[
                pl.BlockSpec((tb, ts, H), lambda i, s: (i, s, 0)),
                pl.BlockSpec((tb, 1), lambda i, s: (i, 0)),
                pl.BlockSpec((H, Dp), lambda i, s: (0, 0)),
                pl.BlockSpec((1, Dp), lambda i, s: (0, 0)),
            ],
            out_specs=pl.BlockSpec((tb, Dp), lambda i, s: (i, 0)),
            scratch_shapes=[pltpu.VMEM((tb, H), jnp.float32)],
        ),
        compiler_params=pltpu.CompilerParams(
            dimension_semantics=("parallel", "arbitrary"),
            vmem_limit_bytes=int(vmem_limit)),
        cost_estimate=pl.CostEstimate(
            flops=int(flops), transcendentals=int(2 * B),
            bytes_accessed=int(bytes_accessed)),
    )(hidden, lengths, w, b)


def _encode_one(hidden, mask, w_p, b_p, vmem_limit):
    """Mean-pool + DensePooler + L2-normalize one side (queries or passages)."""
    B, S, H = hidden.shape
    Dp = w_p.shape[1]
    if hidden.dtype != jnp.bfloat16:
        hidden = hidden.astype(jnp.bfloat16)   # backbones emit bf16 -> no-op then
    ts, S_pad = _choose_seq_tile(S)
    hidden = _pad_to(hidden, S_pad, 1)         # no-op at realistic seq lengths
    # TODO(synk): lengths assume right-padded (prefix) attention masks; an
    # arbitrary mask would need the lane-dense 2D [B,S] mask stream instead.
    lengths = jnp.sum(mask.astype(jnp.int32), axis=1, keepdims=True)   # [B, 1]

    # VMEM budget: double-buffered hidden/out/length tiles + weights + scratch.
    fixed = 2 * (H * Dp + 8 * Dp) * 4
    per_row = 2 * ts * H * 2 + 2 * Dp * 4 + 2 * 128 * 4 + H * 4
    budget = max(int(vmem_limit * 0.8) - fixed, per_row * 8)
    tb = _choose_batch_tile(B, per_row, budget)
    return encode(hidden, lengths, w_p, b_p, tb=tb, ts=ts, vmem_limit=vmem_limit)


# ---------------------------------------------------------------------------
# Kernel 2: similarity + softmax cross-entropy loss
# ---------------------------------------------------------------------------
def make_score_kernel(temperature, bq, bp, tq):
    inv_temp = 1.0 / float(temperature)
    step = bp // bq

    def score_kernel(q_ref, p_ref, scores_ref, nll_ref):
        i = pl.program_id(0)
        q = q_ref[...]                                       # [tq, Dp]     bf16
        p = p_ref[...]                                       # [Bp_pad, Dp] bf16
        # q @ p^T: contract dim 1 of both operands (no explicit transpose),
        # bf16 MXU inputs with f32 accumulation.
        scores = jax.lax.dot_general(
            q, p, (((1,), (1,)), ((), ())),
            preferred_element_type=jnp.float32) * inv_temp
        scores_ref[...] = scores                             # lane-dense store

        tq_, bp_pad = scores.shape
        col = jax.lax.broadcasted_iota(jnp.int32, (tq_, bp_pad), 1)
        row = jax.lax.broadcasted_iota(jnp.int32, (tq_, bp_pad), 0) + i * tq
        col_valid = col < bp

        neg = jnp.float32(-1e30)
        masked = jnp.where(col_valid, scores, neg)
        mx = jnp.max(masked, axis=-1, keepdims=True)
        ex = jnp.where(col_valid, jnp.exp(masked - mx), 0.0)
        lse = jnp.log(jnp.sum(ex, axis=-1, keepdims=True)) + mx
        logprob = scores - lse

        tgt = row * step                                     # arange(Bq)*(Bp//Bq)
        pick = (col == tgt) & (row < bq) & col_valid
        nll = -jnp.sum(jnp.where(pick, logprob, 0.0))        # block partial sum
        nll_ref[...] = jnp.full(nll_ref.shape, nll, jnp.float32)

    return score_kernel


def score_and_loss(q_reps, p_reps, *, bq, bp, temperature, vmem_limit):
    Dp = q_reps.shape[1]
    tq = 128 if bq >= 128 else _round_up(bq, 8)
    bq_pad = _round_up(bq, tq)
    bp_pad = _round_up(bp, 128)
    q_pad = _pad_to(q_reps, bq_pad, 0).astype(jnp.bfloat16)
    p_pad = _pad_to(p_reps, bp_pad, 0).astype(jnp.bfloat16)
    n_blk = bq_pad // tq

    flops = 2 * bq_pad * bp_pad * Dp + 8 * bq_pad * bp_pad
    bytes_accessed = ((bq_pad + bp_pad) * Dp * 2 + bq_pad * bp_pad * 4
                      + n_blk * 8 * 128 * 4)
    scores_pad, nll_parts = pl.pallas_call(
        make_score_kernel(temperature, bq, bp, tq),
        out_shape=(
            jax.ShapeDtypeStruct((bq_pad, bp_pad), jnp.float32),
            jax.ShapeDtypeStruct((n_blk, 8, 128), jnp.float32),
        ),
        grid_spec=pltpu.PrefetchScalarGridSpec(
            num_scalar_prefetch=0,
            grid=(n_blk,),
            in_specs=[
                pl.BlockSpec((tq, Dp), lambda i: (i, 0)),
                pl.BlockSpec((bp_pad, Dp), lambda i: (0, 0)),   # passages resident
            ],
            out_specs=[
                pl.BlockSpec((tq, bp_pad), lambda i: (i, 0)),
                pl.BlockSpec((1, 8, 128), lambda i: (i, 0, 0)),
            ],
        ),
        compiler_params=pltpu.CompilerParams(
            dimension_semantics=("parallel",),
            vmem_limit_bytes=int(vmem_limit)),
        cost_estimate=pl.CostEstimate(
            flops=int(flops), transcendentals=int(bq_pad * bp_pad),
            bytes_accessed=int(bytes_accessed)),
    )(q_pad, p_pad)
    loss = jnp.sum(nll_parts[:, 0, 0]) / bq        # mean over real queries
    return scores_pad[:bq, :bp], loss


# ---------------------------------------------------------------------------
# BiEncoderModel.forward (training path, teacher_score=None)
# ---------------------------------------------------------------------------
def bi_encoder_forward(q_hidden, q_mask, p_hidden, p_mask, w, b, temperature=1.0):
    Bq = q_hidden.shape[0]
    Bp = p_hidden.shape[0]
    D = w.shape[1]
    Dp = _round_up(D, 128)            # lane-dense pooler output (zero-padded cols)
    vmem_limit = _vmem_limit_bytes()

    # Zero-padded pooler columns -> zero rep columns -> norm/scores unchanged.
    w_p = _pad_to(w.astype(jnp.float32), Dp, 1)
    b_p = _pad_to(b.astype(jnp.float32).reshape(1, -1), Dp, 1)

    # Encode queries and passages with two calls on their native shapes: no
    # wrapper concat / recast pass over the hidden states, and the shorter
    # side is never padded up to the longer one.
    q_reps = _encode_one(q_hidden, q_mask, w_p, b_p, vmem_limit)   # [Bq, Dp] f32
    p_reps = _encode_one(p_hidden, p_mask, w_p, b_p, vmem_limit)   # [Bp, Dp] f32

    scores, loss = score_and_loss(q_reps, p_reps, bq=Bq, bp=Bp,
                                  temperature=temperature, vmem_limit=vmem_limit)
    return {
        "q_reps": q_reps[:, :D],
        "p_reps": p_reps[:, :D],
        "scores": scores,
        "loss": loss,
    }


# ---------------------------------------------------------------------------
# Pure-JAX reference for validation (mirrors the torch module)
# ---------------------------------------------------------------------------
def reference_forward(q_hidden, q_mask, p_hidden, p_mask, w, b, temperature=1.0):
    def enc(h, m):
        h = h.astype(jnp.float32)
        m = m.astype(jnp.float32)
        reps = jnp.sum(h * m[:, :, None], axis=1) / jnp.sum(m, axis=1,
                                                            keepdims=True)
        proj = reps @ w + b
        nrm = jnp.sqrt(jnp.sum(proj * proj, axis=-1, keepdims=True))
        return proj / jnp.maximum(nrm, 1e-12)

    q_reps = enc(q_hidden, q_mask)
    p_reps = enc(p_hidden, p_mask)
    scores = (q_reps @ p_reps.T) / temperature
    bq, bp = scores.shape
    tgt = jnp.arange(bq) * (bp // bq)
    logprob = jax.nn.log_softmax(scores, axis=-1)
    loss = -jnp.mean(logprob[jnp.arange(bq), tgt])
    return q_reps, p_reps, scores, loss


if __name__ == "__main__":
    key = jax.random.PRNGKey(0)
    Bq, Bp = 2, 4                    # 2 passages per query
    Sq, Sp = 12, 16                  # different query/passage lengths
    H, D = 128, 96                   # hidden dim, pooler output dim (padded->128)
    temperature = 0.5
    k1, k2, k3, k4 = jax.random.split(key, 4)

    # Backbone outputs arrive in bf16; generate them as bf16 so the kernel and
    # the reference see identical values (the kernel never re-casts them).
    q_hidden = jax.random.normal(k1, (Bq, Sq, H), dtype=jnp.float32).astype(
        jnp.bfloat16)
    p_hidden = jax.random.normal(k2, (Bp, Sp, H), dtype=jnp.float32).astype(
        jnp.bfloat16)

    # Right-padded (prefix) attention masks, as produced by HF tokenizers.
    q_mask = (jnp.arange(Sq)[None, :] < jnp.array([5, 9])[:, None]
              ).astype(jnp.float32)                       # [Bq, Sq]
    p_mask = (jnp.arange(Sp)[None, :] < jnp.array([16, 6, 7, 4])[:, None]
              ).astype(jnp.float32)                       # [Bp, Sp]

    # DensePooler params (tied linear_q == linear_p)
    w = jax.random.normal(k3, (H, D), dtype=jnp.float32) * (1.0 / jnp.sqrt(H))
    bias = jax.random.normal(k4, (D,), dtype=jnp.float32) * 0.01

    out = bi_encoder_forward(q_hidden, q_mask, p_hidden, p_mask, w, bias,
                             temperature=temperature)
    jax.block_until_ready(out)

    ref_q, ref_p, ref_scores, ref_loss = reference_forward(
        q_hidden, q_mask, p_hidden, p_mask, w, bias, temperature=temperature)

    # reps follow an f32 path end-to-end.
    assert jnp.allclose(out["q_reps"], ref_q, atol=2e-4, rtol=2e-4)
    assert jnp.allclose(out["p_reps"], ref_p, atol=2e-4, rtol=2e-4)
    # scores/loss use bf16 MXU inputs (normalized reps) -> ~1e-3 abs error.
    assert jnp.allclose(out["scores"], ref_scores, atol=1e-2, rtol=1e-2)
    assert jnp.allclose(out["loss"], ref_loss, atol=1e-2, rtol=1e-2)

    print("KERNEL_OK")
</pallas_src>

<mosaic_0001>
module attributes {stable_mosaic.version = 11 : i64} {
  func.func @encode_kernel(%arg0: i32, %arg1: i32, %arg2: memref<2x16x128xbf16, #tpu.memory_space<vmem>>, %arg3: memref<2x1xi32, #tpu.memory_space<vmem>>, %arg4: memref<128x128xf32, #tpu.memory_space<vmem>>, %arg5: memref<1x128xf32, #tpu.memory_space<vmem>>, %arg6: memref<2x128xf32, #tpu.memory_space<vmem>>, %arg7: memref<2x128xf32, #tpu.memory_space<vmem>>) attributes {dimension_semantics = [#tpu.dimension_semantics<parallel>, #tpu.dimension_semantics<arbitrary>], iteration_bounds = array<i64: 1, 1>, scalar_prefetch = 0 : i64, scratch_operands = 1 : i64, tpu.core_type = #tpu.core_type<tc>, window_params = [{transform_indices = @transform_0, window_bounds = array<i64: 2, 16, 128>}, {transform_indices = @transform_1, window_bounds = array<i64: 2, 1>}, {pipeline_mode = #tpu.pipeline_mode<synchronous>, transform_indices = @transform_2, window_bounds = array<i64: 128, 128>}, {pipeline_mode = #tpu.pipeline_mode<synchronous>, transform_indices = @transform_3, window_bounds = array<i64: 1, 128>}, {transform_indices = @transform_4, window_bounds = array<i64: 2, 128>}]} {
    %c0_i32 = arith.constant 0 : i32
    %0 = arith.cmpi eq, %arg1, %c0_i32 : i32
    %1 = arith.extui %0 : i1 to i32
    %c0_i32_0 = arith.constant 0 : i32
    %2 = arith.cmpi ne, %1, %c0_i32_0 : i32
    scf.if %2 {
      %cst_11 = arith.constant 0.000000e+00 : f32
      %25 = vector.broadcast %cst_11 : f32 to vector<2x128xf32>
      %c0_12 = arith.constant 0 : index
      %c0_13 = arith.constant 0 : index
      %26 = vector.load %arg7[%c0_12, %c0_13] : memref<2x128xf32, #tpu.memory_space<vmem>>, vector<2x128xf32>
      tpu.vector_store %arg7[%c0_12, %c0_13], %25 {strides = array<i32>} : memref<2x128xf32, #tpu.memory_space<vmem>>, vector<2x128xf32>,
    } else {
    }
    %c0 = arith.constant 0 : index
    %c0_1 = arith.constant 0 : index
    %c0_2 = arith.constant 0 : index
    %3 = vector.load %arg2[%c0, %c0_1, %c0_2] : memref<2x16x128xbf16, #tpu.memory_space<vmem>>, vector<2x16x128xbf16>
    %c0_3 = arith.constant 0 : index
    %c0_4 = arith.constant 0 : index
    %4 = vector.load %arg3[%c0_3, %c0_4] : memref<2x1xi32, #tpu.memory_space<vmem>>, vector<2x1xi32>
    %5 = tpu.iota {dimensions = array<i32: 1>} : vector<2x16x1xi32>
    %c16_i32 = arith.constant 16 : i32
    %6 = arith.muli %arg1, %c16_i32 : i32
    %7 = vector.broadcast %6 : i32 to vector<2x16x1xi32>
    %8 = arith.addi %5, %7 : vector<2x16x1xi32>
    %9 = vector.shape_cast %4 : vector<2x1xi32> to vector<2x1x1xi32>
    %10 = vector.broadcast %9 : vector<2x1x1xi32> to vector<2x16x1xi32>
    %11 = arith.cmpi slt, %8, %10 : vector<2x16x1xi32>
    %12 = arith.extui %11 : vector<2x16x1xi1> to vector<2x16x1xi32>
    %13 = arith.sitofp %12 : vector<2x16x1xi32> to vector<2x16x1xf32>
    %14 = arith.truncf %13 : vector<2x16x1xf32> to vector<2x16x1xbf16>
    %c0_5 = arith.constant 0 : index
    %c0_6 = arith.constant 0 : index
    %15 = vector.load %arg7[%c0_5, %c0_6] : memref<2x128xf32, #tpu.memory_space<vmem>>, vector<2x128xf32>
    %16 = vector.broadcast %14 : vector<2x16x1xbf16> to vector<2x16x128xbf16>
    %17 = arith.mulf %3, %16 : vector<2x16x128xbf16>
    %18 = arith.extf %17 : vector<2x16x128xbf16> to vector<2x16x128xf32>
    %cst = arith.constant dense<0.000000e+00> : vector<2x128xf32>
    %19 = vector.multi_reduction <add>, %18, %cst [1] : vector<2x16x128xf32> to vector<2x128xf32>
    %20 = arith.addf %15, %19 : vector<2x128xf32>
    %c0_7 = arith.constant 0 : index
    %c0_8 = arith.constant 0 : index
    %21 = vector.load %arg7[%c0_7, %c0_8] : memref<2x128xf32, #tpu.memory_space<vmem>>, vector<2x128xf32>
    tpu.vector_store %arg7[%c0_7, %c0_8], %20 {strides = array<i32>} : memref<2x128xf32, #tpu.memory_space<vmem>>, vector<2x128xf32>,
    %c0_i32_9 = arith.constant 0 : i32
    %22 = arith.cmpi eq, %arg1, %c0_i32_9 : i32
    %23 = arith.extui %22 : i1 to i32
    %c0_i32_10 = arith.constant 0 : i32
    %24 = arith.cmpi ne, %23, %c0_i32_10 : i32
    scf.if %24 {
      %25 = arith.sitofp %4 : vector<2x1xi32> to vector<2x1xf32>
      %cst_11 = arith.constant 1.000000e+00 : f32
      %26 = vector.broadcast %cst_11 : f32 to vector<2x1xf32>
      %27 = arith.maximumf %25, %26 : vector<2x1xf32>
      %c0_12 = arith.constant 0 : index
      %c0_13 = arith.constant 0 : index
      %28 = vector.load %arg7[%c0_12, %c0_13] : memref<2x128xf32, #tpu.memory_space<vmem>>, vector<2x128xf32>
      %29 = tpu.reciprocal %27 : vector<2x1xf32> -> vector<2x1xf32>
      %30 = vector.broadcast %29 : vector<2x1xf32> to vector<2x128xf32>
      %31 = arith.mulf %28, %30 : vector<2x128xf32>
      %c0_14 = arith.constant 0 : index
      %c0_15 = arith.constant 0 : index
      %32 = vector.load %arg4[%c0_14, %c0_15] : memref<128x128xf32, #tpu.memory_space<vmem>>, vector<128x128xf32>
      %cst_16 = arith.constant dense<0.000000e+00> : vector<2x128xf32>
      %33 = tpu.matmul %31, %32, %cst_16 {dimension_numbers = #tpu.dot_dimension_numbers<[1], [0], [0], [1], [0, 0, 1, 1], [], []>} : vector<2x128xf32>, vector<128x128xf32>, vector<2x128xf32> -> vector<2x128xf32>
      %c0_17 = arith.constant 0 : index
      %c0_18 = arith.constant 0 : index
      %34 = vector.load %arg5[%c0_17, %c0_18] : memref<1x128xf32, #tpu.memory_space<vmem>>, vector<1x128xf32>
      %35 = vector.broadcast %34 : vector<1x128xf32> to vector<2x128xf32>
      %36 = arith.addf %33, %35 : vector<2x128xf32>
      %37 = arith.mulf %36, %36 : vector<2x128xf32>
      %cst_19 = arith.constant dense<0.000000e+00> : vector<2xf32>
      %38 = vector.multi_reduction <add>, %37, %cst_19 [1] : vector<2x128xf32> to vector<2xf32>
      %39 = vector.shape_cast %38 : vector<2xf32> to vector<2x1xf32>
      %cst_20 = arith.constant 1.000000e-24 : f32
      %40 = vector.broadcast %cst_20 : f32 to vector<2x1xf32>
      %41 = arith.maximumf %39, %40 : vector<2x1xf32>
      %42 = math.rsqrt %41 : vector<2x1xf32>
      %43 = vector.broadcast %42 : vector<2x1xf32> to vector<2x128xf32>
      %44 = arith.mulf %36, %43 : vector<2x128xf32>
      %c0_21 = arith.constant 0 : index
      %c0_22 = arith.constant 0 : index
      %45 = vector.load %arg6[%c0_21, %c0_22] : memref<2x128xf32, #tpu.memory_space<vmem>>, vector<2x128xf32>
      tpu.vector_store %arg6[%c0_21, %c0_22], %44 {strides = array<i32>} : memref<2x128xf32, #tpu.memory_space<vmem>>, vector<2x128xf32>,
    } else {
    }
    return
  }
  func.func @transform_0(%arg0: i32, %arg1: i32) -> (i32, i32, i32) {
    %c0_i32 = arith.constant 0 : i32
    %c0_i32_0 = arith.constant 0 : i32
    return %arg0, %arg1, %c0_i32 : i32, i32, i32
  }
  func.func @transform_1(%arg0: i32, %arg1: i32) -> (i32, i32) {
    %c0_i32 = arith.constant 0 : i32
    %c0_i32_0 = arith.constant 0 : i32
    return %arg0, %c0_i32 : i32, i32
  }
  func.func @transform_2(%arg0: i32, %arg1: i32) -> (i32, i32) {
    %c0_i32 = arith.constant 0 : i32
    %c0_i32_0 = arith.constant 0 : i32
    %c0_i32_1 = arith.constant 0 : i32
    return %c0_i32, %c0_i32_0 : i32, i32
  }
  func.func @transform_3(%arg0: i32, %arg1: i32) -> (i32, i32) {
    %c0_i32 = arith.constant 0 : i32
    %c0_i32_0 = arith.constant 0 : i32
    %c0_i32_1 = arith.constant 0 : i32
    return %c0_i32, %c0_i32_0 : i32, i32
  }
  func.func @transform_4(%arg0: i32, %arg1: i32) -> (i32, i32) {
    %c0_i32 = arith.constant 0 : i32
    %c0_i32_0 = arith.constant 0 : i32
    return %arg0, %c0_i32 : i32, i32
  }
}

</mosaic_0001>

<llo_original>
// kernel: tpu_custom_call.1
$region0: #{tpu_custom_call.1}
  #allocation0 [shape = 'u32[]', space=smem, size = 0x4, offset = 0x4, fixed_abs, tag = 'smem constant byte address 0x4 - core index']
  #allocation1 [shape = 'u32[144,128]{1,0:T(1,128)}', space=vmem, size = 0x12000, scoped, tag = 'internal scratch']
  #allocation2 [shape = 'f32[2,128]{1,0:T(2,128)}', space=vmem, size = 0x400, scoped, tag = 'scratch operand']
  %s0 = inlined_call_operand.hbm [shape: bf16[2,16,128], index: 0, kind: input, shape index: {}]
  %s1 = inlined_call_operand.hbm [shape: s32[2,1], index: 1, kind: input, shape index: {}]
  %s2 = inlined_call_operand.hbm [shape: f32[128,128], index: 2, kind: input, shape index: {}]
  %s3 = inlined_call_operand.hbm [shape: f32[1,128], index: 3, kind: input, shape index: {}]
  %s4 = inlined_call_operand.hbm [shape: f32[2,128], index: 4, kind: output, shape index: {}]
  %s5 = sld [smem:[#allocation0]]
  $region50: #{tpu_custom_call.1} parent=0
    _
  %s7 = ssub.s32 1, %s5
  %s8 = scalar_select 0, %s7, %s5
  $region1: #{tpu_custom_call.1} parent=0
    #allocation3 [shape = 'u8[8192]{0}', space=vmem, size = 0x2000, scoped, tag = 'input window, operand 0, single buffered']
    #allocation4 [shape = 's32[1]{0}', space=sflag, size = 0x4, scoped, tag = 'scoped memory for tpu_custom_call.1']
    #allocation5 [shape = 's32[1]{0}', space=sflag, size = 0x4, scoped, tag = 'scoped memory for tpu_custom_call.1']
    #allocation6 [shape = 'u8[1024]{0}', space=vmem, size = 0x400, scoped, tag = 'input window, operand 1, single buffered']
    #allocation7 [shape = 's32[1]{0}', space=sflag, size = 0x4, scoped, tag = 'scoped memory for tpu_custom_call.1']
    #allocation8 [shape = 'u8[65536]{0}', space=vmem, size = 0x10000, scoped, tag = 'input window, operand 2, single buffered']
    #allocation9 [shape = 'u8[512]{0}', space=vmem, size = 0x400, scoped, tag = 'input window, operand 3, single buffered']
    #allocation10 [shape = 's32[1]{0}', space=sflag, size = 0x4, scoped, tag = 'scoped memory for tpu_custom_call.1']
    #allocation11 [shape = 'u8[1024]{0}', space=vmem, size = 0x400, scoped, tag = 'output window, operand 0, single buffered']
    %9 = vsyncpa [#allocation4], 0
    %10 = vsyncpa [#allocation7], 0
    %11 = vsyncpa [#allocation10], 0
    %12 = vsyncpa [#allocation5], 0
    // Predicated region
    $region2: #{tpu_custom_call.1} parent=1 // pred_check
      _
    $region3: #{tpu_custom_call.1} parent=1 // pred_check_branch
      %14 = sbr.rel (0) target = $region5
    $region4: #{tpu_custom_call.1} parent=1 // pred_region
      %s16 = ssub.s32 256, 256
      %17 = vsyncadd [#allocation4], %s16
      %s18 = sshll.u32 [#allocation3], 4
      %s19 = int_to_ptr.vmem [resolvable:$true] %s18
      %24 = dma.hbm_to_vmem [thread:$0]  %s0, 256, %s19, [#allocation4], 64, 64, 4
    $region5: #{tpu_custom_call.1} parent=1 // pred_fallthru
      _
    // Predicated region
    $region6: #{tpu_custom_call.1} parent=1 // pred_check
      _
    $region7: #{tpu_custom_call.1} parent=1 // pred_check_branch
      %26 = sbr.rel (0) target = $region9
    $region8: #{tpu_custom_call.1} parent=1 // pred_region
      %s28 = ssub.s32 32, 32
      %29 = vsyncadd [#allocation7], %s28
      %s31 = sshll.u32 [#allocation6], 4
      %s32 = int_to_ptr.vmem [resolvable:$true] %s31
      %34 = dma.hbm_to_vmem [thread:$0]  %s1, 32, %s32, [#allocation7]
    $region9: #{tpu_custom_call.1} parent=1 // pred_fallthru
      _
    // Predicated region
    $region10: #{tpu_custom_call.1} parent=1 // pred_check
      _
    $region11: #{tpu_custom_call.1} parent=1 // pred_check_branch
      %36 = sbr.rel (0) target = $region13
    $region12: #{tpu_custom_call.1} parent=1 // pred_region
      %s38 = ssub.s32 2048, 2048
      %39 = vsyncadd [#allocation7], %s38
      %s40 = sshll.u32 [#allocation8], 4
      %s41 = int_to_ptr.vmem [resolvable:$true] %s40
      %46 = dma.hbm_to_vmem [thread:$0]  %s2, 2048, %s41, [#allocation7], 128, 128, 8
    $region13: #{tpu_custom_call.1} parent=1 // pred_fallthru
      _
    // Predicated region
    $region14: #{tpu_custom_call.1} parent=1 // pred_check
      _
    $region15: #{tpu_custom_call.1} parent=1 // pred_check_branch
      %48 = sbr.rel (0) target = $region17
    $region16: #{tpu_custom_call.1} parent=1 // pred_region
      %s50 = ssub.s32 16, 16
      %51 = vsyncadd [#allocation10], %s50
      %s53 = sshll.u32 [#allocation9], 4
      %s54 = int_to_ptr.vmem [resolvable:$true] %s53
      %56 = dma.hbm_to_vmem [thread:$0]  %s3, 16, %s54, [#allocation10]
    $region17: #{tpu_custom_call.1} parent=1 // pred_fallthru
      _
    // Predicated region
    $region18: #{tpu_custom_call.1} parent=1 // pred_check
      _
    $region19: #{tpu_custom_call.1} parent=1 // pred_check_branch
      %58 = sbr.rel (0) target = $region21
    $region20: #{tpu_custom_call.1} parent=1 // pred_region
      %59 = dma.done [#allocation4], 256
    $region21: #{tpu_custom_call.1} parent=1 // pred_fallthru
      _
    // Predicated region
    $region22: #{tpu_custom_call.1} parent=1 // pred_check
      _
    $region23: #{tpu_custom_call.1} parent=1 // pred_check_branch
      %61 = sbr.rel (0) target = $region25
    $region24: #{tpu_custom_call.1} parent=1 // pred_region
      %62 = dma.done [#allocation7], 32
    $region25: #{tpu_custom_call.1} parent=1 // pred_fallthru
      _
    // Predicated region
    $region26: #{tpu_custom_call.1} parent=1 // pred_check
      _
    $region27: #{tpu_custom_call.1} parent=1 // pred_check_branch
      %64 = sbr.rel (0) target = $region29
    $region28: #{tpu_custom_call.1} parent=1 // pred_region
      %65 = dma.done [#allocation7], 2048
    $region29: #{tpu_custom_call.1} parent=1 // pred_fallthru
      _
    // Predicated region
    $region30: #{tpu_custom_call.1} parent=1 // pred_check
      _
    $region31: #{tpu_custom_call.1} parent=1 // pred_check_branch
      %67 = sbr.rel (0) target = $region33
    $region32: #{tpu_custom_call.1} parent=1 // pred_region
      %68 = dma.done [#allocation10], 16
    $region33: #{tpu_custom_call.1} parent=1 // pred_fallthru
      _
    %p69 = scmp.eq.s32.totalorder 0, 0
    // Predicated region
    $region34: #{tpu_custom_call.1} parent=1 // pred_check
      %p70 = pneg %p69
    $region35: #{tpu_custom_call.1} parent=1 // pred_check_branch
      %72 = sbr.rel (%p70) target = $region37
    $region36: #{tpu_custom_call.1} parent=1 // pred_region
      %73 = vst [vmem:[#allocation2] sm:$0x3] 0.0
    $region37: #{tpu_custom_call.1} parent=1 // pred_fallthru
      _
    %v74 = vld [vmem:[#allocation3] sm:$0xf]
    %v75 = vld [vmem:[#allocation3 + $0x4] sm:$0xf]
    %v76 = vld [vmem:[#allocation3 + $0x8] sm:$0xf]
    %v77 = vld [vmem:[#allocation3 + $0xc] sm:$0xf]
    %v78 = vld [vmem:[#allocation6] sm:$0x3]
    %v79 = vlaneseq
    %v80 = vshrl.u32 %v79, 7
    %v81 = vadd.s32 %v80, 8
    %s82 = smul.u32 0, 16
    %v83 = vstv %s82
    %v84 = vadd.s32 %v80, %v83
    %v85 = vadd.s32 %v81, %v83
    %v87 = vunpack.c.l.s4 1966171168
    %v88 = vunpack.c.0.s8 %v87
    %v89 = vlaneseq
    %v90 = vshrl.u32 %v89, 7
    %v91 = vsub.s32 %v88, %v90
    %v92 = vrot.slane %v78, %v91
    %v93 = vcombine.high %v92, %v92
    %v95 = vunpack.c.l.s4 1966171168
    %v96 = vunpack.c.0.s8 %v95
    %v97 = vlaneseq
    %v98 = vshrl.u32 %v97, 7
    %v99 = vsub.s32 %v96, %v98
    %v100 = vrot.slane %v92, %v99
    %v102 = vunpack.c.l.s4 1966171168
    %v103 = vunpack.c.0.s8 %v102
    %v104 = vlaneseq
    %v105 = vshrl.u32 %v104, 7
    %v106 = vsub.s32 %v103, %v105
    %v107 = vrot.slane %v93, %v106
    %v108 = vlaneseq
    %v109 = vshrl.u32 %v108, 7
    %v110 = vsub.s32 0, %v109
    %v111 = vrot.slane %v100, %v110
    %v112 = vlaneseq
    %v113 = vshrl.u32 %v112, 7
    %v114 = vsub.s32 0, %v113
    %v115 = vrot.slane %v107, %v114
    %vm116 = vcmp.lt.s32.totalorder %v84, %v111
    %vm117 = vcmp.lt.s32.totalorder %v85, %v111
    %vm118 = vcmp.lt.s32.totalorder %v84, %v115
    %vm119 = vcmp.lt.s32.totalorder %v85, %v115
    %v120 = vsel %vm116, 1, 0
    %v121 = vsel %vm117, 1, 0
    %v122 = vsel %vm118, 1, 0
    %v123 = vsel %vm119, 1, 0
    %v124 = vcvt.s32.f32 %v120
    %v125 = vcvt.s32.f32 %v121
    %v126 = vcvt.s32.f32 %v122
    %v127 = vcvt.s32.f32 %v123
    %v128 = vpack.c.bf16 %v125, %v124
    %v129 = vpack.c.bf16 %v127, %v126
    %v130 = vld [vmem:[#allocation2] sm:$0x3]
    %132 = vset.pattern.permute.xlu0 0
    %133 = vperm.xlu0 %132, %v128
    %v134 = vpop.permute.xlu0 %133
    %136 = vset.pattern.permute.xlu0 0
    %137 = vperm.xlu0 %136, %v129
    %v138 = vpop.permute.xlu0 %137
    %v142 = vunpack.c.l.s4 839922192
    %v143 = vunpack.c.0.s8 %v142
    %v144 = vlaneseq
    %v145 = vshrl.u32 %v144, 7
    %v146 = vsub.s32 %v143, %v145
    %v147 = vrot.slane %v134, %v146
    %v149 = vunpack.c.l.s4 1985246804
    %v150 = vunpack.c.0.s8 %v149
    %v151 = vlaneseq
    %v152 = vshrl.u32 %v151, 7
    %v153 = vsub.s32 %v150, %v152
    %v154 = vrot.slane %v134, %v153
    %v156 = vunpack.c.l.s4 839922192
    %v157 = vunpack.c.0.s8 %v156
    %v158 = vlaneseq
    %v159 = vshrl.u32 %v158, 7
    %v160 = vsub.s32 %v157, %v159
    %v161 = vrot.slane %v138, %v160
    %v163 = vunpack.c.l.s4 1985246804
    %v164 = vunpack.c.0.s8 %v163
    %v165 = vlaneseq
    %v166 = vshrl.u32 %v165, 7
    %v167 = vsub.s32 %v164, %v166
    %v168 = vrot.slane %v138, %v167
    %v173 = vmul.bf16 %v74, %v147
    %v174 = vmul.bf16 %v75, %v154
    %v175 = vmul.bf16 %v76, %v161
    %v176 = vmul.bf16 %v77, %v168
    %v177 = vunpack.c.l.bf16 %v173
    %v178 = vunpack.c.l.bf16 %v174
    %v179 = vunpack.c.l.bf16 %v175
    %v180 = vunpack.c.l.bf16 %v176
    %v181 = vadd.f32 %v177, %v178
    %v182 = vrot.slane %v181, 4
    %v183 = vadd.f32 %v181, %v182
    %v184 = vrot.slane %v183, 2
    %v185 = vadd.f32 %v183, %v184
    %v186 = vrot.slane %v185, 1
    %v187 = vadd.f32 %v185, %v186
    %v188 = vadd.f32 %v179, %v180
    %v189 = vrot.slane %v188, 4
    %v190 = vadd.f32 %v188, %v189
    %v191 = vrot.slane %v190, 2
    %v192 = vadd.f32 %v190, %v191
    %v193 = vrot.slane %v192, 1
    %v194 = vadd.f32 %v192, %v193
    %vm197 = vcmask 1041409
    %v198 = vsel %vm197, %v194, %v187
    %v200 = vadd.f32 %v130, %v198
    %201 = vst [vmem:[#allocation2] sm:$0x3] %v200
    // Predicated region
    $region38: #{tpu_custom_call.1} parent=1 // pred_check
      %p202 = pneg %p69
    $region39: #{tpu_custom_call.1} parent=1 // pred_check_branch
      %204 = sbr.rel (%p202) target = $region41
    $region40: #{tpu_custom_call.1} parent=1 // pred_region
      %v205 = vcvt.s32.f32 %v78
      %v206 = vmax.f32 %v205, 1.0
      %v207 = vld [vmem:[#allocation2] sm:$0x3]
      %v208 = vrcp.pop %v206
      %210 = vset.pattern.permute.xlu0 0
      %211 = vperm.xlu0 %210, %v208
      %v212 = vpop.permute.xlu0 %211
      %v214 = vmul.f32 %v207, %v212
      %v215 = vld [vmem:[#allocation8] sm:$0xff]
      %v216 = vld [vmem:[#allocation8 + $0x8] sm:$0xff]
      %v217 = vld [vmem:[#allocation8 + $0x10] sm:$0xff]
      %v218 = vld [vmem:[#allocation8 + $0x18] sm:$0xff]
      %v219 = vld [vmem:[#allocation8 + $0x20] sm:$0xff]
      %v220 = vld [vmem:[#allocation8 + $0x28] sm:$0xff]
      %v221 = vld [vmem:[#allocation8 + $0x30] sm:$0xff]
      %v222 = vld [vmem:[#allocation8 + $0x38] sm:$0xff]
      %v223 = vld [vmem:[#allocation8 + $0x40] sm:$0xff]
      %v224 = vld [vmem:[#allocation8 + $0x48] sm:$0xff]
      %v225 = vld [vmem:[#allocation8 + $0x50] sm:$0xff]
      %v226 = vld [vmem:[#allocation8 + $0x58] sm:$0xff]
      %v227 = vld [vmem:[#allocation8 + $0x60] sm:$0xff]
      %v228 = vld [vmem:[#allocation8 + $0x68] sm:$0xff]
      %v229 = vld [vmem:[#allocation8 + $0x70] sm:$0xff]
      %v230 = vld [vmem:[#allocation8 + $0x78] sm:$0xff]
      %v231 = vld [vmem:[#allocation9] sm:$0x1]
      %v233 = vlaneseq
      %v234 = vshrl.u32 %v233, 7
      %v235 = vsub.s32 0, %v234
      %v236 = vrot.slane %v231, %v235
      %238 = vmatprep.subr.mxu0 0.0
      %239 = vmatpush1.msra.mxu0 %v215
      %240 = vmatprep.subr.mxu0 0.0
      %241 = vmatpush1.msra.mxu0 %v216
      %242 = vmatprep.subr.mxu0 0.0
      %243 = vmatpush1.msra.mxu0 %v217
      %244 = vmatprep.subr.mxu0 0.0
      %245 = vmatpush1.msra.mxu0 %v218
      %246 = vmatprep.subr.mxu0 0.0
      %247 = vmatpush1.msra.mxu0 %v219
      %248 = vmatprep.subr.mxu0 0.0
      %249 = vmatpush1.msra.mxu0 %v220
      %250 = vmatprep.subr.mxu0 0.0
      %251 = vmatpush1.msra.mxu0 %v221
      %252 = vmatprep.subr.mxu0 0.0
      %253 = vmatpush1.msra.mxu0 %v222
      %254 = vmatprep.subr.mxu0 0.0
      %255 = vmatpush1.msra.mxu0 %v223
      %256 = vmatprep.subr.mxu0 0.0
      %257 = vmatpush1.msra.mxu0 %v224
      %258 = vmatprep.subr.mxu0 0.0
      %259 = vmatpush1.msra.mxu0 %v225
      %260 = vmatprep.subr.mxu0 0.0
      %261 = vmatpush1.msra.mxu0 %v226
      %262 = vmatprep.subr.mxu0 0.0
      %263 = vmatpush1.msra.mxu0 %v227
      %264 = vmatprep.subr.mxu0 0.0
      %265 = vmatpush1.msra.mxu0 %v228
      %266 = vmatprep.subr.mxu0 0.0
      %267 = vmatpush1.msra.mxu0 %v229
      %268 = vmatprep.subr.mxu0 0.0
      %269 = vmatpush1.msra.mxu0 %v230
      %270 = vmatprep.subr.mxu0 0.0
      %271 = vmatpush1.msra.mxu0 0.0
      %272 = vmatprep.subr.mxu0 0.0
      %273 = vmatpush1.msra.mxu0 0.0
      %274 = vmatprep.subr.mxu0 0.0
      %275 = vmatpush1.msra.mxu0 0.0
      %276 = vmatprep.subr.mxu0 0.0
      %277 = vmatpush1.msra.mxu0 0.0
      %278 = vmatprep.subr.mxu0 0.0
      %279 = vmatpush1.msra.mxu0 0.0
      %280 = vmatprep.subr.mxu0 0.0
      %281 = vmatpush1.msra.mxu0 0.0
      %282 = vmatprep.subr.mxu0 0.0
      %283 = vmatpush1.msra.mxu0 0.0
      %284 = vmatprep.subr.mxu0 0.0
      %285 = vmatpush1.msra.mxu0 0.0
      %286 = vmatprep.subr.mxu0 0.0
      %287 = vmatpush1.msra.mxu0 0.0
      %288 = vmatprep.subr.mxu0 0.0
      %289 = vmatpush1.msra.mxu0 0.0
      %290 = vmatprep.subr.mxu0 0.0
      %291 = vmatpush1.msra.mxu0 0.0
      %292 = vmatprep.subr.mxu0 0.0
      %293 = vmatpush1.msra.mxu0 0.0
      %294 = vmatprep.subr.mxu0 0.0
      %295 = vmatpush1.msra.mxu0 0.0
      %296 = vmatprep.subr.mxu0 0.0
      %297 = vmatpush1.msra.mxu0 0.0
      %298 = vmatprep.subr.mxu0 0.0
      %299 = vmatpush1.msra.mxu0 0.0
      %300 = vmatprep.subr.mxu0 0.0
      %301 = vmatpush1.msra.mxu0 0.0
      %302 = vmatprep.mubr.f32.mxu0 0.0
      %303 = vmatmul.mubr.f32.gmra.mrb[0].mxu0 %v214
      %v304 = vpop.f32.mrb[0].mxu0
      %v305 = vadd.f32 %v236, %v304
      %v306 = vpop.f32.mrb[0].mxu0
      %307 = vdwg.mxu0
      %v308 = vmul.f32 %v305, %v305
      %vm309 = vcmask 1041408
      %v310 = vsel %vm309, %v308, 0.0
      %311 = vadd.xlane.f32.xlu0 %v310
      %v312 = vpop.xlane.xlu0 %311
      %v313 = vmax.f32 %v312, 1e-24
      %v314 = vrsqrt.pop %v313
      %v315 = vmul.f32 %v305, %v314
      %316 = vst [vmem:[#allocation11] sm:$0x3] %v315
    $region41: #{tpu_custom_call.1} parent=1 // pred_fallthru
      _
    // Predicated region
    $region42: #{tpu_custom_call.1} parent=1 // pred_check
      _
    $region43: #{tpu_custom_call.1} parent=1 // pred_check_branch
      %318 = sbr.rel (0) target = $region45
    $region44: #{tpu_custom_call.1} parent=1 // pred_region
      %s320 = ssub.s32 32, 32
      %321 = vsyncadd [#allocation5], %s320
      %s323 = sshll.u32 [#allocation11], 4
      %s324 = int_to_ptr.vmem [resolvable:$true] %s323
      %326 = dma.vmem_to_hbm [thread:$0]  %s324, 32, %s4, [#allocation5]
    $region45: #{tpu_custom_call.1} parent=1 // pred_fallthru
      _
    // Predicated region
    $region46: #{tpu_custom_call.1} parent=1 // pred_check
      _
    $region47: #{tpu_custom_call.1} parent=1 // pred_check_branch
      %328 = sbr.rel (0) target = $region49
    $region48: #{tpu_custom_call.1} parent=1 // pred_region
      %329 = dma.done [#allocation5], 32
    $region49: #{tpu_custom_call.1} parent=1 // pred_fallthru
      _
    %330 = vsyncpa [#allocation4], 1
    %331 = vsyncpa [#allocation7], 1
    %332 = vsyncpa [#allocation10], 1
    %333 = vsyncpa [#allocation5], 1

</llo_original>
